<compile_context>
chip_gen: v6e
topology: v6e:2x2x1
jax: 0.10.0
libtpu: 0.0.40
codegen_flags: <defaults>
</compile_context>

<pallas_src>
import math

import jax
import jax.numpy as jnp
from jax.experimental import pallas as pl
from jax.experimental.pallas import tpu as pltpu


def _round_up(a: int, b: int) -> int:
    return (a + b - 1) // b * b


def _vmem_capacity_bytes() -> int:
    """Physical VMEM per core; conservative 64 MiB fallback if query fails."""
    try:
        cap = int(pltpu.get_tpu_info().vmem_capacity_bytes)
        if cap > 0:
            return cap
    except Exception:
        pass
    return 64 << 20


def _choose_t_ff(d_ff: int, t_ff: int) -> int:
    """Largest divisor of d_ff <= requested t_ff, preferring multiples of 128
    (lane-aligned h split), then multiples of 8 (sublane), else d_ff."""
    t_ff = max(1, min(t_ff, d_ff))
    for align in (128, 8):
        t = (t_ff // align) * align
        while t >= align:
            if d_ff % t == 0:
                return t
            t -= align
    return d_ff


def pack_swiglu_weights(w1, w3, w2, *, t_ff: int, dtype=None):
    """Pack weights once (outside the hot path in real use).

    w1, w3: [d_ff, d_model];  w2: [d_model, d_ff].
    Returns:
      w13: [n_k, d_model, 2*t_ff]  chunk-major; chunk k = [w1_k^T | w3_k^T]
      w2t: [d_ff, d_model]
    """
    d_ff, d_model = w1.shape
    assert d_ff % t_ff == 0
    n_k = d_ff // t_ff
    dtype = dtype or w1.dtype
    w1t = jnp.transpose(w1).reshape(d_model, n_k, t_ff)
    w3t = jnp.transpose(w3).reshape(d_model, n_k, t_ff)
    w13 = jnp.concatenate([w1t, w3t], axis=-1)      # [d_model, n_k, 2*t_ff]
    w13 = jnp.transpose(w13, (1, 0, 2))             # [n_k, d_model, 2*t_ff]
    w2t = jnp.transpose(w2)                         # [d_ff, d_model]
    return w13.astype(dtype), w2t.astype(dtype)


def _swiglu_partial(x_ref, w13_ref, w2t_ref):
    """One d_ff chunk: W2_k^T-projected silu(W1_k x) * (W3_k x), f32."""
    # One MXU dot for both gate projections of this chunk.
    h = jnp.dot(x_ref[...], w13_ref[...], preferred_element_type=jnp.float32)
    t_ff = h.shape[-1] // 2
    h1 = h[:, :t_ff]
    h3 = h[:, t_ff:]
    # SiLU(h1) * h3; approx reciprocal runs on the EUP instead of a VALU divide.
    sig = pl.reciprocal(1.0 + jnp.exp(-h1), approx=True)
    gated = h1 * sig * h3
    return jnp.dot(gated.astype(w2t_ref.dtype), w2t_ref[...],
                   preferred_element_type=jnp.float32)


def swiglu_kernel_accout(x_ref, w13_ref, w2t_ref, o_ref):
    """f32 output: accumulate directly into the (revisited) output block."""
    k = pl.program_id(1)

    @pl.when(k == 0)
    def _():
        o_ref[...] = jnp.zeros_like(o_ref)

    o_ref[...] += _swiglu_partial(x_ref, w13_ref, w2t_ref)


def swiglu_kernel_scratch(x_ref, w13_ref, w2t_ref, o_ref, acc_ref):
    """Non-f32 output: f32 VMEM accumulator, cast once at the last k step."""
    k = pl.program_id(1)

    @pl.when(k == 0)
    def _():
        acc_ref[...] = jnp.zeros_like(acc_ref)

    acc_ref[...] += _swiglu_partial(x_ref, w13_ref, w2t_ref)

    @pl.when(k == pl.num_programs(1) - 1)
    def _():
        o_ref[...] = acc_ref[...].astype(o_ref.dtype)


def swiglu_packed(x, w13, w2t, t_ff, *, tm=None, out_dtype=None):
    """x: [..., d_model] (already in compute dtype); packed weights as above."""
    n_k, d_model, two_t_ff = w13.shape
    assert two_t_ff == 2 * t_ff
    d_ff = n_k * t_ff
    assert w2t.shape == (d_ff, d_model)
    out_dtype = jnp.dtype(out_dtype if out_dtype is not None else x.dtype)

    lead = x.shape[:-1]
    M = math.prod(lead) if lead else 1
    x2d = x.reshape(M, d_model)

    cap = _vmem_capacity_bytes()
    vmem_target = int(cap * 0.85)          # ~108 MiB on 128 MiB parts, ~54 MiB on v7x
    two_core = cap <= (96 << 20)           # 64 MiB parts have 2 TensorCores/chip

    if tm is None:
        tm = 1024 if cap >= (100 << 20) else 512

    in_b = x2d.dtype.itemsize
    out_b = out_dtype.itemsize
    acc_in_out = out_dtype == jnp.dtype(jnp.float32)
    row_align = {4: 8, 2: 16, 1: 32}.get(in_b, 8)

    def est_vmem(tm_):
        e = 2 * (tm_ * d_model * in_b           # x tile (double-buffered)
                 + d_model * 2 * t_ff * in_b    # fused gate weight chunk
                 + t_ff * d_model * in_b        # w2^T chunk
                 + tm_ * d_model * out_b)       # out tile
        if not acc_in_out:
            e += tm_ * d_model * 4              # f32 scratch accumulator
        e += 3 * tm_ * 2 * t_ff * 4             # h / gated f32 temporaries
        return e

    # Row tile: as large as requested / auto, rounded to the sublane multiple,
    # shrunk until it fits the VMEM budget.
    tm_eff = max(row_align, _round_up(min(tm, _round_up(M, row_align)), row_align))
    while tm_eff > row_align and est_vmem(tm_eff) > vmem_target:
        tm_eff = max(row_align, _round_up(tm_eff // 2, row_align))
    # Dual-TensorCore chips: make sure the "parallel" row axis has >= 2 programs.
    if two_core and M <= tm_eff and M >= 2 * row_align:
        tm_eff = _round_up((M + 1) // 2, row_align)

    M_pad = _round_up(M, tm_eff)
    if M_pad != M:
        x2d = jnp.pad(x2d, ((0, M_pad - M), (0, 0)))

    est = est_vmem(tm_eff)
    vmem_limit = max(min(max(int(est * 1.25), 32 << 20), vmem_target), est)
    vmem_limit = int(min(vmem_limit, cap))   # never request beyond physical

    grid = (M_pad // tm_eff, n_k)            # reduction (d_ff) axis last

    in_specs = [
        pl.BlockSpec((tm_eff, d_model), lambda i, k: (i, 0)),             # x
        pl.BlockSpec((None, d_model, 2 * t_ff), lambda i, k: (k, 0, 0)),  # [w1|w3]^T chunk (contiguous)
        pl.BlockSpec((t_ff, d_model), lambda i, k: (k, 0)),               # w2^T chunk
    ]
    out_spec = pl.BlockSpec((tm_eff, d_model), lambda i, k: (i, 0))

    if acc_in_out:
        kernel, scratch = swiglu_kernel_accout, []
    else:
        kernel = swiglu_kernel_scratch
        scratch = [pltpu.VMEM((tm_eff, d_model), jnp.float32)]

    out2d = pl.pallas_call(
        kernel,
        out_shape=jax.ShapeDtypeStruct((M_pad, d_model), out_dtype),
        grid_spec=pltpu.PrefetchScalarGridSpec(
            num_scalar_prefetch=0,
            grid=grid,
            in_specs=in_specs,
            out_specs=out_spec,
            scratch_shapes=scratch),
        compiler_params=pltpu.CompilerParams(
            dimension_semantics=("parallel", "arbitrary"),
            vmem_limit_bytes=vmem_limit),
    )(x2d, w13, w2t)

    out2d = out2d[:M]
    return out2d.reshape(*lead, d_model)


def swiglu(x, w1, w3, w2, *, tm=None, t_ff=None, compute_dtype=None):
    """Convenience wrapper matching the PyTorch module's forward.

    x: [..., d_model]; w1, w3: [d_ff, d_model]; w2: [d_model, d_ff].
    compute_dtype defaults to bfloat16 (f32 accumulation); output keeps x.dtype.
    In a real model call pack_swiglu_weights() once and reuse swiglu_packed().
    """
    d_ff, d_model = w1.shape
    assert w3.shape == (d_ff, d_model) and w2.shape == (d_model, d_ff)
    compute_dtype = jnp.dtype(compute_dtype if compute_dtype is not None
                              else jnp.bfloat16)
    if t_ff is None:
        t_ff = 512 if _vmem_capacity_bytes() >= (100 << 20) else 256
    t_ff_eff = _choose_t_ff(d_ff, t_ff)
    w13, w2t = pack_swiglu_weights(w1, w3, w2, t_ff=t_ff_eff, dtype=compute_dtype)
    return swiglu_packed(x.astype(compute_dtype), w13, w2t, t_ff_eff,
                         tm=tm, out_dtype=x.dtype)


def swiglu_ref(x, w1, w3, w2):
    h1 = jnp.einsum('fd,...d->...f', w1, x)
    h3 = jnp.einsum('fd,...d->...f', w3, x)
    g = h1 * (1.0 / (1.0 + jnp.exp(-h1))) * h3
    return jnp.einsum('df,...f->...d', w2, g)


def _rel_err(a, b):
    return jnp.linalg.norm(a.astype(jnp.float32) - b) / jnp.linalg.norm(b)


if __name__ == "__main__":
    batch, seq = 2, 8
    d_model, d_ff = 128, 256   # small but hardware-tile-friendly (mult. of 128)

    key = jax.random.PRNGKey(0)
    kx, k1, k3, k2 = jax.random.split(key, 4)

    x = jax.random.normal(kx, (batch, seq, d_model), dtype=jnp.float32)
    # trunc_normal_(std=1, a=-3, b=3): standard normal truncated to [-3, 3]
    w1 = jax.random.truncated_normal(k1, -3.0, 3.0, (d_ff, d_model), jnp.float32)
    w3 = jax.random.truncated_normal(k3, -3.0, 3.0, (d_ff, d_model), jnp.float32)
    w2 = jax.random.truncated_normal(k2, -3.0, 3.0, (d_model, d_ff), jnp.float32)

    ref = swiglu_ref(x, w1, w3, w2)

    # Explicit f32 compute path: n_k=2 streamed reduction, accumulate-into-output.
    out_f32 = jax.block_until_ready(
        swiglu(x, w1, w3, w2, tm=256, t_ff=128, compute_dtype=jnp.float32))
    assert out_f32.shape == (batch, seq, d_model)
    assert _rel_err(out_f32, ref) < 2e-2, "f32 kernel mismatch vs reference"

    # Default path: auto tiles, bf16 compute / f32 accumulation, f32 output.
    out_auto = jax.block_until_ready(swiglu(x, w1, w3, w2))
    assert out_auto.shape == (batch, seq, d_model)
    assert out_auto.dtype == x.dtype
    assert _rel_err(out_auto, ref) < 6e-2, "default/bf16 kernel mismatch vs reference"

    # bf16 in / bf16 out path (exercises the f32-scratch accumulator kernel).
    out_bf = jax.block_until_ready(
        swiglu(x.astype(jnp.bfloat16), w1, w3, w2, t_ff=128))
    assert out_bf.dtype == jnp.bfloat16
    assert _rel_err(out_bf, ref) < 6e-2, "bf16 kernel mismatch vs reference"

    # Ragged row count (exercises M padding and row-tile rounding).
    x_odd = jax.random.normal(kx, (3, 5, d_model), dtype=jnp.float32)
    out_odd = jax.block_until_ready(swiglu(x_odd, w1, w3, w2))
    assert out_odd.shape == (3, 5, d_model)
    assert _rel_err(out_odd, swiglu_ref(x_odd, w1, w3, w2)) < 6e-2

    print("KERNEL_OK")
</pallas_src>

<mosaic_0001>
module attributes {stable_mosaic.version = 11 : i64} {
  func.func @swiglu_kernel_accout(%arg0: i32, %arg1: i32, %arg2: memref<8x128xf32, #tpu.memory_space<vmem>>, %arg3: memref<1x128x256xf32, #tpu.memory_space<vmem>>, %arg4: memref<128x128xf32, #tpu.memory_space<vmem>>, %arg5: memref<8x128xf32, #tpu.memory_space<vmem>>) attributes {dimension_semantics = [#tpu.dimension_semantics<parallel>, #tpu.dimension_semantics<arbitrary>], iteration_bounds = array<i64: 2, 2>, scalar_prefetch = 0 : i64, scratch_operands = 0 : i64, tpu.core_type = #tpu.core_type<tc>, window_params = [{transform_indices = @transform_0, window_bounds = array<i64: 8, 128>}, {transform_indices = @transform_1, window_bounds = array<i64: 1, 128, 256>}, {transform_indices = @transform_2, window_bounds = array<i64: 128, 128>}, {transform_indices = @transform_3, window_bounds = array<i64: 8, 128>}]} {
    %c0_i32 = arith.constant 0 : i32
    %0 = arith.cmpi eq, %arg1, %c0_i32 : i32
    %1 = arith.extui %0 : i1 to i32
    %c0_i32_0 = arith.constant 0 : i32
    %2 = arith.cmpi ne, %1, %c0_i32_0 : i32
    scf.if %2 {
      %cst_14 = arith.constant 0.000000e+00 : f32
      %22 = vector.broadcast %cst_14 : f32 to vector<8x128xf32>
      %c0_15 = arith.constant 0 : index
      %c0_16 = arith.constant 0 : index
      %23 = vector.load %arg5[%c0_15, %c0_16] : memref<8x128xf32, #tpu.memory_space<vmem>>, vector<8x128xf32>
      tpu.vector_store %arg5[%c0_15, %c0_16], %22 {strides = array<i32>} : memref<8x128xf32, #tpu.memory_space<vmem>>, vector<8x128xf32>,
    } else {
    }
    %c0 = arith.constant 0 : index
    %c0_1 = arith.constant 0 : index
    %3 = vector.load %arg5[%c0, %c0_1] : memref<8x128xf32, #tpu.memory_space<vmem>>, vector<8x128xf32>
    %c0_2 = arith.constant 0 : index
    %c0_3 = arith.constant 0 : index
    %4 = vector.load %arg2[%c0_2, %c0_3] : memref<8x128xf32, #tpu.memory_space<vmem>>, vector<8x128xf32>
    %c0_4 = arith.constant 0 : index
    %c0_5 = arith.constant 0 : index
    %c0_6 = arith.constant 0 : index
    %5 = vector.load %arg3[%c0_4, %c0_5, %c0_6] : memref<1x128x256xf32, #tpu.memory_space<vmem>>, vector<1x128x256xf32>
    %6 = vector.shape_cast %5 : vector<1x128x256xf32> to vector<128x256xf32>
    %cst = arith.constant dense<0.000000e+00> : vector<8x256xf32>
    %7 = tpu.matmul %4, %6, %cst {dimension_numbers = #tpu.dot_dimension_numbers<[1], [0], [0], [1], [0, 0, 1, 1], [], []>} : vector<8x128xf32>, vector<128x256xf32>, vector<8x256xf32> -> vector<8x256xf32>
    %8 = vector.extract_strided_slice %7 {offsets = [0, 0], sizes = [8, 128], strides = [1, 1]} : vector<8x256xf32> to vector<8x128xf32>
    %9 = vector.extract_strided_slice %7 {offsets = [0, 128], sizes = [8, 128], strides = [1, 1]} : vector<8x256xf32> to vector<8x128xf32>
    %cst_7 = arith.constant 0.000000e+00 : f32
    %10 = vector.broadcast %cst_7 : f32 to vector<8x128xf32>
    %11 = arith.subf %10, %8 : vector<8x128xf32>
    %12 = math.exp %11 : vector<8x128xf32>
    %cst_8 = arith.constant 1.000000e+00 : f32
    %13 = vector.broadcast %cst_8 : f32 to vector<8x128xf32>
    %14 = arith.addf %13, %12 : vector<8x128xf32>
    %15 = tpu.reciprocal %14 {approx = true} : vector<8x128xf32> -> vector<8x128xf32>
    %16 = arith.mulf %8, %15 : vector<8x128xf32>
    %17 = arith.mulf %16, %9 : vector<8x128xf32>
    %c0_9 = arith.constant 0 : index
    %c0_10 = arith.constant 0 : index
    %18 = vector.load %arg4[%c0_9, %c0_10] : memref<128x128xf32, #tpu.memory_space<vmem>>, vector<128x128xf32>
    %cst_11 = arith.constant dense<0.000000e+00> : vector<8x128xf32>
    %19 = tpu.matmul %17, %18, %cst_11 {dimension_numbers = #tpu.dot_dimension_numbers<[1], [0], [0], [1], [0, 0, 1, 1], [], []>} : vector<8x128xf32>, vector<128x128xf32>, vector<8x128xf32> -> vector<8x128xf32>
    %20 = arith.addf %3, %19 : vector<8x128xf32>
    %c0_12 = arith.constant 0 : index
    %c0_13 = arith.constant 0 : index
    %21 = vector.load %arg5[%c0_12, %c0_13] : memref<8x128xf32, #tpu.memory_space<vmem>>, vector<8x128xf32>
    tpu.vector_store %arg5[%c0_12, %c0_13], %20 {strides = array<i32>} : memref<8x128xf32, #tpu.memory_space<vmem>>, vector<8x128xf32>,
    return
  }
  func.func @transform_0(%arg0: i32, %arg1: i32) -> (i32, i32) {
    %c0_i32 = arith.constant 0 : i32
    %c0_i32_0 = arith.constant 0 : i32
    return %arg0, %c0_i32 : i32, i32
  }
  func.func @transform_1(%arg0: i32, %arg1: i32) -> (i32, i32, i32) {
    %c0_i32 = arith.constant 0 : i32
    %c0_i32_0 = arith.constant 0 : i32
    %c0_i32_1 = arith.constant 0 : i32
    return %arg1, %c0_i32, %c0_i32_0 : i32, i32, i32
  }
  func.func @transform_2(%arg0: i32, %arg1: i32) -> (i32, i32) {
    %c0_i32 = arith.constant 0 : i32
    %c0_i32_0 = arith.constant 0 : i32
    return %arg1, %c0_i32 : i32, i32
  }
  func.func @transform_3(%arg0: i32, %arg1: i32) -> (i32, i32) {
    %c0_i32 = arith.constant 0 : i32
    %c0_i32_0 = arith.constant 0 : i32
    return %arg0, %c0_i32 : i32, i32
  }
}

</mosaic_0001>

<llo_original>
// kernel: tpu_custom_call.1
$region0: #{tpu_custom_call.1}
  #allocation0 [shape = 'u32[]', space=smem, size = 0x4, offset = 0x4, fixed_abs, tag = 'smem constant byte address 0x4 - core index']
  #allocation1 [shape = 'u32[144,128]{1,0:T(1,128)}', space=vmem, size = 0x12000, scoped, tag = 'internal scratch']
  %s0 = inlined_call_operand.hbm [shape: f32[16,128], index: 0, kind: input, shape index: {}]
  %s1 = inlined_call_operand.hbm [shape: f32[2,128,256], index: 1, kind: input, shape index: {}]
  %s2 = inlined_call_operand.hbm [shape: f32[256,128], index: 2, kind: input, shape index: {}]
  %s3 = inlined_call_operand.hbm [shape: f32[16,128], index: 3, kind: output, shape index: {}]
  %s4 = sld [smem:[#allocation0]]
  $region61: #{tpu_custom_call.1} parent=0
    _
  %s6 = ssub.s32 1, %s4
  %s7 = scalar_select 0, %s6, %s4
  $region1: #{tpu_custom_call.1} parent=0
    #allocation2 [shape = 'u8[8192]{0}', space=vmem, size = 0x2000, scoped, tag = 'input window, operand 0']
    #allocation3 [shape = 's32[2]{0}', space=sflag, size = 0x8, scoped, tag = 'scoped memory for tpu_custom_call.1']
    #allocation4 [shape = 's32[2]{0}', space=sflag, size = 0x8, scoped, tag = 'scoped memory for tpu_custom_call.1']
    #allocation5 [shape = 'u8[262144]{0}', space=vmem, size = 0x40000, scoped, tag = 'input window, operand 1']
    #allocation6 [shape = 's32[2]{0}', space=sflag, size = 0x8, scoped, tag = 'scoped memory for tpu_custom_call.1']
    #allocation7 [shape = 'u8[131072]{0}', space=vmem, size = 0x20000, scoped, tag = 'input window, operand 2']
    #allocation8 [shape = 'u8[8192]{0}', space=vmem, size = 0x2000, scoped, tag = 'output window, operand 0']
    %8 = vsyncpa [#allocation3], 0
    %s9 = scalar_lea.sflag [#allocation3], 1
    %10 = vsyncpa %s9, 0
    %11 = vsyncpa [#allocation6], 0
    %s12 = scalar_lea.sflag [#allocation6], 1
    %13 = vsyncpa %s12, 0
    %14 = vsyncpa [#allocation4], 0
    %s15 = scalar_lea.sflag [#allocation4], 1
    %16 = vsyncpa %s15, 0
    loop: start=0, step=1, limit=6
    $region2: #{tpu_custom_call.1} parent=1 // loop_pre_header
      _
    $region3: #{tpu_custom_call.1} parent=1 // loop_header
      %s18 = sphi 0, %s22
      %p19 = scmp.ge.s32.totalorder %s18, 6
      %s25 = sphi 0, %s37
      %s26 = sphi 0, %s33
      %s27 = sphi 0, %s25
      %s28 = sphi 0, %s26
      %s29 = sphi 0, %s27
      %s30 = sphi 0, %s28
      %s40 = sphi 0, %s42
      %s43 = sphi 0, %s40
      %s44 = sphi 0, %s43
      %s60 = sphi 0, %s44
      %s66 = sphi 0, %s68
      %s69 = sphi 0, %s66
      %s70 = sphi 0, %s69
      %s86 = sphi 0, %s70
      %s92 = sphi 0, %s94
      %s95 = sphi 0, %s92
      %s96 = sphi 0, %s95
      %s112 = sphi 0, %s96
      %s118 = sphi 0, %s120
      %s121 = sphi 0, %s118
      %s122 = sphi 0, %s121
      %s138 = sphi 0, %s122
    $region4: #{tpu_custom_call.1} parent=1 // loop_header_branch
      %21 = sbr.rel (%p19) target = $region8
    $region5: #{tpu_custom_call.1} parent=1 // loop_body
      %s23 = ssub.s32 %s18, 1
      %s24 = ssub.s32 %s18, 2
      %s31 = sadd.s32 1, %s26
      %p32 = scmp.ge.s32.totalorder %s31, 2
      %s33 = scalar_select %p32, 0, %s31
      %s34 = sadd.s32 1, %s25
      %s35 = scalar_select %p32, %s34, %s25
      %p36 = scmp.ge.s32.totalorder %s35, 2
      %s37 = scalar_select %p36, 0, %s35
      %s38 = ssub.s32 %s25, %s37
      %p39 = scmp.eq.s32.totalorder %s38, 0
      %s41 = sadd.s32 %s40, 1
      %s42 = scalar_select %p39, %s40, %s41
      %p45 = pneg %p39
      %p46 = scmp.eq.s32.totalorder %s18, 3
      %p47 = por %p45, %p46
      %p48 = scmp.ne.s32.totalorder %s40, %s43
      %p49 = scmp.eq.s32.totalorder %s18, 0
      %p50 = por %p48, %p49
      %p51 = scmp.ne.s32.totalorder %s40, %s43
      %p52 = scmp.eq.s32.totalorder %s23, 3
      %p53 = por %p51, %p52
      %p54 = scmp.ne.s32.totalorder %s43, %s44
      %p55 = scmp.eq.s32.totalorder %s23, 0
      %p56 = por %p54, %p55
      %p57 = scmp.ne.s32.totalorder %s43, %s44
      %p58 = scmp.eq.s32.totalorder %s24, 3
      %p59 = por %p57, %p58
      %p61 = scmp.ne.s32.totalorder %s44, %s60
      %p62 = scmp.eq.s32.totalorder %s24, 0
      %p63 = por %p61, %p62
      %s64 = ssub.s32 %s26, %s33
      %p65 = scmp.eq.s32.totalorder %s64, 0
      %s67 = sadd.s32 %s66, 1
      %s68 = scalar_select %p65, %s66, %s67
      %p71 = pneg %p65
      %p72 = scmp.eq.s32.totalorder %s18, 3
      %p73 = por %p71, %p72
      %p74 = scmp.ne.s32.totalorder %s66, %s69
      %p75 = scmp.eq.s32.totalorder %s18, 0
      %p76 = por %p74, %p75
      %p77 = scmp.ne.s32.totalorder %s66, %s69
      %p78 = scmp.eq.s32.totalorder %s23, 3
      %p79 = por %p77, %p78
      %p80 = scmp.ne.s32.totalorder %s69, %s70
      %p81 = scmp.eq.s32.totalorder %s23, 0
      %p82 = por %p80, %p81
      %p83 = scmp.ne.s32.totalorder %s69, %s70
      %p84 = scmp.eq.s32.totalorder %s24, 3
      %p85 = por %p83, %p84
      %p87 = scmp.ne.s32.totalorder %s70, %s86
      %p88 = scmp.eq.s32.totalorder %s24, 0
      %p89 = por %p87, %p88
      %s90 = ssub.s32 %s26, %s33
      %p91 = scmp.eq.s32.totalorder %s90, 0
      %s93 = sadd.s32 %s92, 1
      %s94 = scalar_select %p91, %s92, %s93
      %p97 = pneg %p91
      %p98 = scmp.eq.s32.totalorder %s18, 3
      %p99 = por %p97, %p98
      %p100 = scmp.ne.s32.totalorder %s92, %s95
      %p101 = scmp.eq.s32.totalorder %s18, 0
      %p102 = por %p100, %p101
      %p103 = scmp.ne.s32.totalorder %s92, %s95
      %p104 = scmp.eq.s32.totalorder %s23, 3
      %p105 = por %p103, %p104
      %p106 = scmp.ne.s32.totalorder %s95, %s96
      %p107 = scmp.eq.s32.totalorder %s23, 0
      %p108 = por %p106, %p107
      %p109 = scmp.ne.s32.totalorder %s95, %s96
      %p110 = scmp.eq.s32.totalorder %s24, 3
      %p111 = por %p109, %p110
      %p113 = scmp.ne.s32.totalorder %s96, %s112
      %p114 = scmp.eq.s32.totalorder %s24, 0
      %p115 = por %p113, %p114
      %s116 = ssub.s32 %s25, %s37
      %p117 = scmp.eq.s32.totalorder %s116, 0
      %s119 = sadd.s32 %s118, 1
      %s120 = scalar_select %p117, %s118, %s119
      %p123 = pneg %p117
      %p124 = scmp.eq.s32.totalorder %s18, 3
      %p125 = por %p123, %p124
      %p126 = scmp.ne.s32.totalorder %s118, %s121
      %p127 = scmp.eq.s32.totalorder %s18, 0
      %p128 = por %p126, %p127
      %p129 = scmp.ne.s32.totalorder %s118, %s121
      %p130 = scmp.eq.s32.totalorder %s23, 3
      %p131 = por %p129, %p130
      %p132 = scmp.ne.s32.totalorder %s121, %s122
      %p133 = scmp.eq.s32.totalorder %s23, 0
      %p134 = por %p132, %p133
      %p135 = scmp.ne.s32.totalorder %s121, %s122
      %p136 = scmp.eq.s32.totalorder %s24, 3
      %p137 = por %p135, %p136
      %p139 = scmp.ne.s32.totalorder %s122, %s138
      %p140 = scmp.eq.s32.totalorder %s24, 0
      %p141 = por %p139, %p140
      %p142 = scmp.le.s32.totalorder 1, %s18
      %p143 = scmp.lt.s32.totalorder %s18, 5
      %p144 = pnand %p142, %p143
      %p145 = pneg %p144
      // Predicated region
      $region9: #{tpu_custom_call.1} parent=5 // pred_check
        _
      $region10: #{tpu_custom_call.1} parent=5 // pred_check_branch
        %147 = sbr.rel (%p144) target = $region12
      $region11: #{tpu_custom_call.1} parent=5 // pred_region
        %s148 = ssub.s32 %s18, 1
      $region12: #{tpu_custom_call.1} parent=5 // pred_fallthru
        _
      %p149 = scmp.lt.s32.totalorder %s18, 4
      // Predicated region
      $region13: #{tpu_custom_call.1} parent=5 // pred_check
        %p150 = pneg %p149
      $region14: #{tpu_custom_call.1} parent=5 // pred_check_branch
        %152 = sbr.rel (%p150) target = $region16
      $region15: #{tpu_custom_call.1} parent=5 // pred_region
        // Predicated region
        $region17: #{tpu_custom_call.1} parent=15 // pred_check
          %p153 = pneg %p50
        $region18: #{tpu_custom_call.1} parent=15 // pred_check_branch
          %155 = sbr.rel (%p153) target = $region20
        $region19: #{tpu_custom_call.1} parent=15 // pred_region
          %s156 = sand.u32 %s40, 1
          %s157 = scalar_lea.sflag [#allocation3], %s156
          %s158 = sand.u32 %s40, 1
          %s159 = smul.addr %s158, 8
          %s160 = scalar_lea.vmem [#allocation2], %s159
          %s162 = ssub.s32 128, 128
          %163 = vsyncadd %s157, %s162
          %s164 = smul.addr %s25, 128
          %s165 = scalar_lea.hbm %s0, %s164
          %s167 = sshll.u32 %s160, 4
          %s168 = int_to_ptr.vmem [resolvable:$true] %s167
          %170 = dma.hbm_to_vmem [thread:$0]  %s165, 128, %s168, %s157
        $region20: #{tpu_custom_call.1} parent=15 // pred_fallthru
          _
        // Predicated region
        $region21: #{tpu_custom_call.1} parent=15 // pred_check
          %p171 = pneg %p76
        $region22: #{tpu_custom_call.1} parent=15 // pred_check_branch
          %173 = sbr.rel (%p171) target = $region24
        $region23: #{tpu_custom_call.1} parent=15 // pred_region
          %s174 = sand.u32 %s18, 1
          %s175 = scalar_lea.sflag [#allocation6], %s174
          %s176 = sand.u32 %s66, 1
          %s177 = smul.addr %s176, 256
          %s178 = scalar_lea.vmem [#allocation5], %s177
          %s180 = ssub.s32 4096, 4096
          %181 = vsyncadd %s175, %s180
          %s182 = smul.addr %s26, 32
          %s183 = smul.addr %s182, 128
          %s184 = scalar_lea.hbm %s1, %s183
          %s185 = sshll.u32 %s178, 4
          %s186 = int_to_ptr.vmem [resolvable:$true] %s185
          %191 = dma.hbm_to_vmem [thread:$0]  %s184, 4096, %s186, %s175, 256, 256, 16
        $region24: #{tpu_custom_call.1} parent=15 // pred_fallthru
          _
        // Predicated region
        $region25: #{tpu_custom_call.1} parent=15 // pred_check
          %p192 = pneg %p102
        $region26: #{tpu_custom_call.1} parent=15 // pred_check_branch
          %194 = sbr.rel (%p192) target = $region28
        $region27: #{tpu_custom_call.1} parent=15 // pred_region
          %s195 = sand.u32 %s18, 1
          %s196 = scalar_lea.sflag [#allocation6], %s195
          %s197 = sand.u32 %s92, 1
          %s198 = smul.addr %s197, 128
          %s199 = scalar_lea.vmem [#allocation7], %s198
          %s200 = smul.u32 16, %s26
          %s202 = ssub.s32 2048, 2048
          %203 = vsyncadd %s196, %s202
          %s204 = smul.addr %s200, 128
          %s205 = scalar_lea.hbm %s2, %s204
          %s206 = sshll.u32 %s199, 4
          %s207 = int_to_ptr.vmem [resolvable:$true] %s206
          %212 = dma.hbm_to_vmem [thread:$0]  %s205, 2048, %s207, %s196, 128, 128, 8
        $region28: #{tpu_custom_call.1} parent=15 // pred_fallthru
          _
      $region16: #{tpu_custom_call.1} parent=5 // pred_fallthru
        _
      %p213 = scmp.le.s32.totalorder 1, %s18
      %p214 = scmp.lt.s32.totalorder %s18, 5
      %p215 = pnand %p213, %p214
      %p216 = pneg %p215
      // Predicated region
      $region29: #{tpu_custom_call.1} parent=5 // pred_check
        _
      $region30: #{tpu_custom_call.1} parent=5 // pred_check_branch
        %218 = sbr.rel (%p215) target = $region32
      $region31: #{tpu_custom_call.1} parent=5 // pred_region
        %s219 = ssub.s32 %s18, 1
        %s220 = sand.u32 %s43, 1
        %s221 = scalar_lea.sflag [#allocation3], %s220
        %s222 = sand.u32 %s43, 1
        %s223 = smul.addr %s222, 8
        %s224 = scalar_lea.vmem [#allocation2], %s223
        // Predicated region
        $region33: #{tpu_custom_call.1} parent=31 // pred_check
          %p225 = pneg %p56
        $region34: #{tpu_custom_call.1} parent=31 // pred_check_branch
          %227 = sbr.rel (%p225) target = $region36
        $region35: #{tpu_custom_call.1} parent=31 // pred_region
          %228 = dma.done %s221, 128
        $region36: #{tpu_custom_call.1} parent=31 // pred_fallthru
          _
        %s229 = sand.u32 %s23, 1
        %s230 = scalar_lea.sflag [#allocation6], %s229
        %s231 = sand.u32 %s69, 1
        %s232 = smul.addr %s231, 256
        %s233 = scalar_lea.vmem [#allocation5], %s232
        // Predicated region
        $region37: #{tpu_custom_call.1} parent=31 // pred_check
          %p234 = pneg %p82
        $region38: #{tpu_custom_call.1} parent=31 // pred_check_branch
          %236 = sbr.rel (%p234) target = $region40
        $region39: #{tpu_custom_call.1} parent=31 // pred_region
          %237 = dma.done %s230, 4096
        $region40: #{tpu_custom_call.1} parent=31 // pred_fallthru
          _
        %s238 = sand.u32 %s23, 1
        %s239 = scalar_lea.sflag [#allocation6], %s238
        %s240 = sand.u32 %s95, 1
        %s241 = smul.addr %s240, 128
        %s242 = scalar_lea.vmem [#allocation7], %s241
        // Predicated region
        $region41: #{tpu_custom_call.1} parent=31 // pred_check
          %p243 = pneg %p108
        $region42: #{tpu_custom_call.1} parent=31 // pred_check_branch
          %245 = sbr.rel (%p243) target = $region44
        $region43: #{tpu_custom_call.1} parent=31 // pred_region
          %246 = dma.done %s239, 2048
        $region44: #{tpu_custom_call.1} parent=31 // pred_fallthru
          _
        %s247 = sand.u32 %s43, 1
        %s248 = scalar_lea.sflag [#allocation3], %s247
        %s249 = sand.u32 %s43, 1
        %s250 = smul.addr %s249, 8
        %s251 = scalar_lea.vmem [#allocation2], %s250
        %p252 = pneg %p56
        %p253 = pneg %p53
        %s254 = sand.u32 %s23, 1
        %s255 = scalar_lea.sflag [#allocation6], %s254
        %s256 = sand.u32 %s69, 1
        %s257 = smul.addr %s256, 256
        %s258 = scalar_lea.vmem [#allocation5], %s257
        %p259 = pneg %p82
        %p260 = pneg %p79
        %s261 = sand.u32 %s23, 1
        %s262 = scalar_lea.sflag [#allocation6], %s261
        %s263 = sand.u32 %s95, 1
        %s264 = smul.addr %s263, 128
        %s265 = scalar_lea.vmem [#allocation7], %s264
        %p266 = pneg %p108
        %p267 = pneg %p105
        %p268 = pneg %p134
        %p269 = pneg %p131
        %s270 = sand.u32 %s121, 1
        %s271 = scalar_lea.sflag [#allocation4], %s270
        %s272 = sand.u32 %s121, 1
        %s273 = smul.addr %s272, 8
        %s274 = scalar_lea.vmem [#allocation8], %s273
        %s275 = smul.u32 16, %s28
        %p276 = scmp.eq.s32.totalorder %s28, 0
        // Predicated region
        $region45: #{tpu_custom_call.1} parent=31 // pred_check
          %p277 = pneg %p276
        $region46: #{tpu_custom_call.1} parent=31 // pred_check_branch
          %279 = sbr.rel (%p277) target = $region48
        $region47: #{tpu_custom_call.1} parent=31 // pred_region
          %280 = vst [vmem:[%s274] sm:$0xff] 0.0
        $region48: #{tpu_custom_call.1} parent=31 // pred_fallthru
          _
        %v281 = vld [vmem:[%s274] sm:$0xff]
        %v282 = vld [vmem:[%s224] sm:$0xff]
        %v283 = vld [vmem:[%s233] sm:$0xff]
        %v284 = vld [vmem:[%s233 + $0x8] sm:$0xff]
        %v285 = vld [vmem:[%s233 + $0x10] sm:$0xff]
        %v286 = vld [vmem:[%s233 + $0x18] sm:$0xff]
        %v287 = vld [vmem:[%s233 + $0x20] sm:$0xff]
        %v288 = vld [vmem:[%s233 + $0x28] sm:$0xff]
        %v289 = vld [vmem:[%s233 + $0x30] sm:$0xff]
        %v290 = vld [vmem:[%s233 + $0x38] sm:$0xff]
        %v291 = vld [vmem:[%s233 + $0x40] sm:$0xff]
        %v292 = vld [vmem:[%s233 + $0x48] sm:$0xff]
        %v293 = vld [vmem:[%s233 + $0x50] sm:$0xff]
        %v294 = vld [vmem:[%s233 + $0x58] sm:$0xff]
        %v295 = vld [vmem:[%s233 + $0x60] sm:$0xff]
        %v296 = vld [vmem:[%s233 + $0x68] sm:$0xff]
        %v297 = vld [vmem:[%s233 + $0x70] sm:$0xff]
        %v298 = vld [vmem:[%s233 + $0x78] sm:$0xff]
        %v299 = vld [vmem:[%s233 + $0x80] sm:$0xff]
        %v300 = vld [vmem:[%s233 + $0x88] sm:$0xff]
        %v301 = vld [vmem:[%s233 + $0x90] sm:$0xff]
        %v302 = vld [vmem:[%s233 + $0x98] sm:$0xff]
        %v303 = vld [vmem:[%s233 + $0xa0] sm:$0xff]
        %v304 = vld [vmem:[%s233 + $0xa8] sm:$0xff]
        %v305 = vld [vmem:[%s233 + $0xb0] sm:$0xff]
        %v306 = vld [vmem:[%s233 + $0xb8] sm:$0xff]
        %v307 = vld [vmem:[%s233 + $0xc0] sm:$0xff]
        %v308 = vld [vmem:[%s233 + $0xc8] sm:$0xff]
        %v309 = vld [vmem:[%s233 + $0xd0] sm:$0xff]
        %v310 = vld [vmem:[%s233 + $0xd8] sm:$0xff]
        %v311 = vld [vmem:[%s233 + $0xe0] sm:$0xff]
        %v312 = vld [vmem:[%s233 + $0xe8] sm:$0xff]
        %v313 = vld [vmem:[%s233 + $0xf0] sm:$0xff]
        %v314 = vld [vmem:[%s233 + $0xf8] sm:$0xff]
        %315 = vmatprep.subr.mxu0 %v314
        %316 = vmatpush1.msra.mxu0 %v313
        %317 = vmatprep.subr.mxu0 %v312
        %318 = vmatpush1.msra.mxu0 %v311
        %319 = vmatprep.subr.mxu0 %v310
        %320 = vmatpush1.msra.mxu0 %v309
        %321 = vmatprep.subr.mxu0 %v308
        %322 = vmatpush1.msra.mxu0 %v307
        %323 = vmatprep.subr.mxu0 %v306
        %324 = vmatpush1.msra.mxu0 %v305
        %325 = vmatprep.subr.mxu0 %v304
        %326 = vmatpush1.msra.mxu0 %v303
        %327 = vmatprep.subr.mxu0 %v302
        %328 = vmatpush1.msra.mxu0 %v301
        %329 = vmatprep.subr.mxu0 %v300
        %330 = vmatpush1.msra.mxu0 %v299
        %331 = vmatprep.subr.mxu0 %v298
        %332 = vmatpush1.msra.mxu0 %v297
        %333 = vmatprep.subr.mxu0 %v296
        %334 = vmatpush1.msra.mxu0 %v295
        %335 = vmatprep.subr.mxu0 %v294
        %336 = vmatpush1.msra.mxu0 %v293
        %337 = vmatprep.subr.mxu0 %v292
        %338 = vmatpush1.msra.mxu0 %v291
        %339 = vmatprep.subr.mxu0 %v290
        %340 = vmatpush1.msra.mxu0 %v289
        %341 = vmatprep.subr.mxu0 %v288
        %342 = vmatpush1.msra.mxu0 %v287
        %343 = vmatprep.subr.mxu0 %v286
        %344 = vmatpush1.msra.mxu0 %v285
        %345 = vmatprep.subr.mxu0 %v284
        %346 = vmatpush1.msra.mxu0 %v283
        %347 = vmatprep.subr.mxu0 0.0
        %348 = vmatpush2.msra.mxu0 0.0
        %349 = vmatprep.subr.mxu0 0.0
        %350 = vmatpush2.msra.mxu0 0.0
        %351 = vmatprep.subr.mxu0 0.0
        %352 = vmatpush2.msra.mxu0 0.0
        %353 = vmatprep.subr.mxu0 0.0
        %354 = vmatpush2.msra.mxu0 0.0
        %355 = vmatprep.subr.mxu0 0.0
        %356 = vmatpush2.msra.mxu0 0.0
        %357 = vmatprep.subr.mxu0 0.0
        %358 = vmatpush2.msra.mxu0 0.0
        %359 = vmatprep.subr.mxu0 0.0
        %360 = vmatpush2.msra.mxu0 0.0
        %361 = vmatprep.subr.mxu0 0.0
        %362 = vmatpush2.msra.mxu0 0.0
        %363 = vmatprep.subr.mxu0 0.0
        %364 = vmatpush2.msra.mxu0 0.0
        %365 = vmatprep.subr.mxu0 0.0
        %366 = vmatpush2.msra.mxu0 0.0
        %367 = vmatprep.subr.mxu0 0.0
        %368 = vmatpush2.msra.mxu0 0.0
        %369 = vmatprep.subr.mxu0 0.0
        %370 = vmatpush2.msra.mxu0 0.0
        %371 = vmatprep.subr.mxu0 0.0
        %372 = vmatpush2.msra.mxu0 0.0
        %373 = vmatprep.subr.mxu0 0.0
        %374 = vmatpush2.msra.mxu0 0.0
        %375 = vmatprep.subr.mxu0 0.0
        %376 = vmatpush2.msra.mxu0 0.0
        %377 = vmatprep.subr.mxu0 0.0
        %378 = vmatpush2.msra.mxu0 0.0
        %379 = vmatprep.mubr.f32.mxu0 0.0
        %380 = vmatmul.mubr.f32.gmra.mxu0 %v282
        %v381 = vpop.f32.mrf.mxu0
        %v382 = vadd.f32 0.0, %v381
        %v383 = vpop.f32.mrf.mxu0
        %v384 = vadd.f32 0.0, %v383
        %385 = vdwg.mxu0
        %v386 = vsub.f32 0.0, %v382
        %v387 = vmul.f32 %v386, 1.442695
        %v388 = vpow.pop %v387
        %v389 = vadd.f32 %v388, 1.0
        %v390 = vrcp.pop %v389
        %v391 = vmul.f32 %v382, %v390
        %v392 = vmul.f32 %v391, %v384
        %v393 = vld [vmem:[%s242] sm:$0xff]
        %v394 = vld [vmem:[%s242 + $0x8] sm:$0xff]
        %v395 = vld [vmem:[%s242 + $0x10] sm:$0xff]
        %v396 = vld [vmem:[%s242 + $0x18] sm:$0xff]
        %v397 = vld [vmem:[%s242 + $0x20] sm:$0xff]
        %v398 = vld [vmem:[%s242 + $0x28] sm:$0xff]
        %v399 = vld [vmem:[%s242 + $0x30] sm:$0xff]
        %v400 = vld [vmem:[%s242 + $0x38] sm:$0xff]
        %v401 = vld [vmem:[%s242 + $0x40] sm:$0xff]
        %v402 = vld [vmem:[%s242 + $0x48] sm:$0xff]
        %v403 = vld [vmem:[%s242 + $0x50] sm:$0xff]
        %v404 = vld [vmem:[%s242 + $0x58] sm:$0xff]
        %v405 = vld [vmem:[%s242 + $0x60] sm:$0xff]
        %v406 = vld [vmem:[%s242 + $0x68] sm:$0xff]
        %v407 = vld [vmem:[%s242 + $0x70] sm:$0xff]
        %v408 = vld [vmem:[%s242 + $0x78] sm:$0xff]
        %409 = vmatprep.subr.mxu0 0.0
        %410 = vmatpush1.msra.mxu0 %v408
        %411 = vmatprep.subr.mxu0 0.0
        %412 = vmatpush1.msra.mxu0 %v407
        %413 = vmatprep.subr.mxu0 0.0
        %414 = vmatpush1.msra.mxu0 %v406
        %415 = vmatprep.subr.mxu0 0.0
        %416 = vmatpush1.msra.mxu0 %v405
        %417 = vmatprep.subr.mxu0 0.0
        %418 = vmatpush1.msra.mxu0 %v404
        %419 = vmatprep.subr.mxu0 0.0
        %420 = vmatpush1.msra.mxu0 %v403
        %421 = vmatprep.subr.mxu0 0.0
        %422 = vmatpush1.msra.mxu0 %v402
        %423 = vmatprep.subr.mxu0 0.0
        %424 = vmatpush1.msra.mxu0 %v401
        %425 = vmatprep.subr.mxu0 0.0
        %426 = vmatpush1.msra.mxu0 %v400
        %427 = vmatprep.subr.mxu0 0.0
        %428 = vmatpush1.msra.mxu0 %v399
        %429 = vmatprep.subr.mxu0 0.0
        %430 = vmatpush1.msra.mxu0 %v398
        %431 = vmatprep.subr.mxu0 0.0
        %432 = vmatpush1.msra.mxu0 %v397
        %433 = vmatprep.subr.mxu0 0.0
        %434 = vmatpush1.msra.mxu0 %v396
        %435 = vmatprep.subr.mxu0 0.0
        %436 = vmatpush1.msra.mxu0 %v395
        %437 = vmatprep.subr.mxu0 0.0
        %438 = vmatpush1.msra.mxu0 %v394
        %439 = vmatprep.subr.mxu0 0.0
        %440 = vmatpush1.msra.mxu0 %v393
        %441 = vmatprep.subr.mxu0 0.0
        %442 = vmatpush2.msra.mxu0 0.0
        %443 = vmatprep.subr.mxu0 0.0
        %444 = vmatpush2.msra.mxu0 0.0
        %445 = vmatprep.subr.mxu0 0.0
        %446 = vmatpush2.msra.mxu0 0.0
        %447 = vmatprep.subr.mxu0 0.0
        %448 = vmatpush2.msra.mxu0 0.0
        %449 = vmatprep.subr.mxu0 0.0
        %450 = vmatpush2.msra.mxu0 0.0
        %451 = vmatprep.subr.mxu0 0.0
        %452 = vmatpush2.msra.mxu0 0.0
        %453 = vmatprep.subr.mxu0 0.0
        %454 = vmatpush2.msra.mxu0 0.0
        %455 = vmatprep.subr.mxu0 0.0
        %456 = vmatpush2.msra.mxu0 0.0
        %457 = vmatprep.subr.mxu0 0.0
        %458 = vmatpush2.msra.mxu0 0.0
        %459 = vmatprep.subr.mxu0 0.0
        %460 = vmatpush2.msra.mxu0 0.0
        %461 = vmatprep.subr.mxu0 0.0
        %462 = vmatpush2.msra.mxu0 0.0
        %463 = vmatprep.subr.mxu0 0.0
        %464 = vmatpush2.msra.mxu0 0.0
        %465 = vmatprep.subr.mxu0 0.0
        %466 = vmatpush2.msra.mxu0 0.0
        %467 = vmatprep.subr.mxu0 0.0
        %468 = vmatpush2.msra.mxu0 0.0
        %469 = vmatprep.subr.mxu0 0.0
        %470 = vmatpush2.msra.mxu0 0.0
        %471 = vmatprep.subr.mxu0 0.0
        %472 = vmatpush2.msra.mxu0 0.0
        %473 = vmatprep.mubr.f32.mxu0 0.0
        %474 = vmatmul.mubr.f32.gmra.mxu0 %v392
        %v475 = vpop.f32.mrf.mxu0
        %v476 = vadd.f32 0.0, %v475
        %v477 = vpop.f32.mrf.mxu0
        %478 = vdwg.mxu0
        %v479 = vadd.f32 %v281, %v476
        %480 = vst [vmem:[%s274] sm:$0xff] %v479
        %s481 = sand.u32 %s121, 1
        %s482 = scalar_lea.sflag [#allocation4], %s481
        %s483 = sand.u32 %s121, 1
        %s484 = smul.addr %s483, 8
        %s485 = scalar_lea.vmem [#allocation8], %s484
        // Predicated region
        $region49: #{tpu_custom_call.1} parent=31 // pred_check
          %p486 = pneg %p131
        $region50: #{tpu_custom_call.1} parent=31 // pred_check_branch
          %488 = sbr.rel (%p486) target = $region52
        $region51: #{tpu_custom_call.1} parent=31 // pred_region
          %s490 = ssub.s32 128, 128
          %491 = vsyncadd %s482, %s490
          %s492 = smul.addr %s27, 128
          %s493 = scalar_lea.hbm %s3, %s492
          %s495 = sshll.u32 %s485, 4
          %s496 = int_to_ptr.vmem [resolvable:$true] %s495
          %498 = dma.vmem_to_hbm [thread:$0]  %s496, 128, %s493, %s482
        $region52: #{tpu_custom_call.1} parent=31 // pred_fallthru
          _
      $region32: #{tpu_custom_call.1} parent=5 // pred_fallthru
        _
      %p499 = scmp.le.s32.totalorder 2, %s18
      // Predicated region
      $region53: #{tpu_custom_call.1} parent=5 // pred_check
        %p500 = pneg %p499
      $region54: #{tpu_custom_call.1} parent=5 // pred_check_branch
        %502 = sbr.rel (%p500) target = $region56
      $region55: #{tpu_custom_call.1} parent=5 // pred_region
        %s503 = ssub.s32 %s18, 2
        // Predicated region
        $region57: #{tpu_custom_call.1} parent=55 // pred_check
          %p504 = pneg %p137
        $region58: #{tpu_custom_call.1} parent=55 // pred_check_branch
          %506 = sbr.rel (%p504) target = $region60
        $region59: #{tpu_custom_call.1} parent=55 // pred_region
          %s507 = sand.u32 %s122, 1
          %s508 = scalar_lea.sflag [#allocation4], %s507
          %s509 = sand.u32 %s122, 1
          %s510 = smul.addr %s509, 8
          %s511 = scalar_lea.vmem [#allocation8], %s510
          %512 = dma.done %s508, 128
        $region60: #{tpu_custom_call.1} parent=55 // pred_fallthru
          _
      $region56: #{tpu_custom_call.1} parent=5 // pred_fallthru
        _
    $region6: #{tpu_custom_call.1} parent=1 // loop_footer
      %s22 = sadd.s32 1, %s18
    $region7: #{tpu_custom_call.1} parent=1 // loop_footer_branch
      %17 = sbr.rel target = $region3
    $region8: #{tpu_custom_call.1} parent=1 // loop_exit
      _
    %513 = vsyncpa [#allocation3], 1
    %s514 = scalar_lea.sflag [#allocation3], 1
    %515 = vsyncpa %s514, 1
    %516 = vsyncpa [#allocation6], 1
    %s517 = scalar_lea.sflag [#allocation6], 1
    %518 = vsyncpa %s517, 1
    %519 = vsyncpa [#allocation4], 1
    %s520 = scalar_lea.sflag [#allocation4], 1
    %521 = vsyncpa %s520, 1

</llo_original>
